<compile_context>
chip_gen: v5e
topology: v5e:2x2
jax: 0.10.0
libtpu: 0.0.40
codegen_flags: <defaults>
</compile_context>

<pallas_src>
import jax
import jax.numpy as jnp
from jax import lax
from jax.experimental import pallas as pl
from jax.experimental.pallas import tpu as pltpu

_INV_SQRT2 = 0.7071067811865476
_EPS = 1e-6
_LANE = 128


def _gelu_exact(z):
    # PyTorch nn.GELU() default: exact erf-based GELU (f32).
    return 0.5 * z * (1.0 + lax.erf(z * _INV_SQRT2))


def _double_conv_kernel(x_ref, m_ref, e_ref, w1_ref, p1_ref, w2_ref, p2_ref, o_ref):
    # x_ref : (C_in, BL)      bf16   BL = block_batch * Lp (batch folded into lanes)
    # m_ref : (1, BL)         f32    user mask (zero in the L..Lp pad region)
    # e_ref : (2, BL)         bf16   [not_first_pos, not_last_pos] per-sample edges
    # w*_ref: (C_out, 3*C_in) bf16   taps packed along the contraction dim
    # p*_ref: (3, C_out, 1)   f32    [bias, gamma, beta]
    # o_ref : (C_out2, BL)    f32
    not_first = e_ref[0:1]          # (1, BL) bf16, 0 where pos == 0
    not_last = e_ref[1:2]           # (1, BL) bf16, 0 where pos == Lp-1
    mask = m_ref[...]               # (1, BL) f32

    b1, g1, be1 = p1_ref[0], p1_ref[1], p1_ref[2]
    b2, g2, be2 = p2_ref[0], p2_ref[1], p2_ref[2]

    def conv_k3(h, w, bias):
        # Single MXU matmul per conv: stack the three taps along the
        # contraction dim.  Zeroing the source lane at each per-sample edge
        # before the roll reproduces Conv1d's zero padding exactly and kills
        # roll leakage across sample boundaries within the folded lane axis.
        h_prev = jnp.roll(h * not_last, 1, axis=1)    # lane l <- x[l-1]
        h_next = jnp.roll(h * not_first, -1, axis=1)  # lane l <- x[l+1]
        h3 = jnp.concatenate([h_prev, h, h_next], axis=0)        # (3*C, BL) bf16
        y = jnp.dot(w, h3, preferred_element_type=jnp.float32)   # (C_out, BL) f32
        return y + bias

    def layer_norm(y, gamma, beta):
        # Matches the custom LayerNorm: mean/std over channels, torch.std is
        # unbiased (ddof=1), eps added to the std (not the variance).
        c = y.shape[0]
        mean = jnp.mean(y, axis=0, keepdims=True)
        cen = y - mean
        var = jnp.sum(cen * cen, axis=0, keepdims=True) / (c - 1)
        inv = 1.0 / (jnp.sqrt(var) + _EPS)
        return gamma * (cen * inv) + beta

    h = conv_k3(x_ref[...], w1_ref[...], b1)
    h = layer_norm(h, g1, be1)
    h = _gelu_exact(h) * mask

    h = conv_k3(h.astype(jnp.bfloat16), w2_ref[...], b2)
    h = layer_norm(h, g2, be2)
    h = _gelu_exact(h) * mask

    o_ref[...] = h.astype(o_ref.dtype)


def double_conv_pallas(x, mask, params, *, block_batch=None,
                       vmem_budget_bytes=16 * 1024 * 1024):
    """x: (N, C_in, L) f32, mask: (N, 1, L), params from make_params."""
    N, C_in, L = x.shape
    w1, p1, w2, p2 = params["w1"], params["p1"], params["w2"], params["p2"]
    c_mid = p1.shape[1]
    c_out = p2.shape[1]
    assert w1.shape == (c_mid, 3 * C_in), w1.shape
    assert w2.shape == (c_out, 3 * c_mid), w2.shape
    # LayerNorm uses torch.std (ddof=1): needs at least 2 channels.
    assert c_mid >= 2 and c_out >= 2, "channel LayerNorm needs >= 2 channels"

    # Lane-dense length: pad L to a multiple of 128.  Zero-padding x and the
    # mask makes padded positions behave exactly like Conv1d's zero padding.
    lp = max(_LANE, ((L + _LANE - 1) // _LANE) * _LANE)

    if block_batch is None:
        # VMEM-aware batch block (double-buffered pipelined blocks + rough
        # in-kernel temporaries), safe for v7x's 64 MiB VMEM.
        bytes_per_sample = lp * (
            2 * (2 * C_in + 4 + 4 * c_out)      # x bf16 / mask f32 / out f32, x2 buffers
            + 2 * 3 * (C_in + c_mid)            # bf16 tap stacks (both convs)
            + 4 * 6 * max(c_mid, c_out)         # f32 LN/GELU temporaries
        )
        block_batch = int(max(1, min(N, vmem_budget_bytes // max(bytes_per_sample, 1), 512)))

    # Pad N up so every batch size is handled (no dropped tail samples).
    n_pad = -(-N // block_batch) * block_batch
    bl = block_batch * lp

    x_p = jnp.pad(x, ((0, n_pad - N), (0, 0), (0, lp - L))).astype(jnp.bfloat16)
    m_p = jnp.pad(mask.astype(jnp.float32), ((0, n_pad - N), (0, 0), (0, lp - L)))
    # Fold batch into the lane axis: (Np, C, Lp) -> (C, Np*Lp).
    x2 = jnp.transpose(x_p, (1, 0, 2)).reshape(C_in, n_pad * lp)
    m2 = jnp.transpose(m_p, (1, 0, 2)).reshape(1, n_pad * lp)

    # Per-sample boundary multipliers, computed once on the host side.
    pos = jnp.arange(bl, dtype=jnp.int32) % lp
    edge = jnp.stack([(pos != 0), (pos != lp - 1)], axis=0).astype(jnp.bfloat16)

    grid = (n_pad // block_batch,)
    grid_spec = pltpu.PrefetchScalarGridSpec(
        num_scalar_prefetch=0,
        grid=grid,
        in_specs=[
            pl.BlockSpec((C_in, bl), lambda b: (0, b)),
            pl.BlockSpec((1, bl), lambda b: (0, b)),
            pl.BlockSpec((2, bl), lambda b: (0, 0)),            # grid-invariant
            pl.BlockSpec((c_mid, 3 * C_in), lambda b: (0, 0)),  # grid-invariant
            pl.BlockSpec((3, c_mid, 1), lambda b: (0, 0, 0)),
            pl.BlockSpec((c_out, 3 * c_mid), lambda b: (0, 0)),
            pl.BlockSpec((3, c_out, 1), lambda b: (0, 0, 0)),
        ],
        out_specs=pl.BlockSpec((c_out, bl), lambda b: (0, b)),
    )

    out2 = pl.pallas_call(
        _double_conv_kernel,
        out_shape=jax.ShapeDtypeStruct((c_out, n_pad * lp), jnp.float32),
        grid_spec=grid_spec,
        compiler_params=pltpu.CompilerParams(
            dimension_semantics=("parallel",),
            vmem_limit_bytes=48 * 1024 * 1024,
        ),
    )(x2, m2, edge, w1, p1, w2, p2)

    # Unfold lanes back to (N, C_out, L).
    out = out2.reshape(c_out, n_pad, lp).transpose(1, 0, 2)[:N, :, :L]
    return out


def make_params(key, in_channels, out_channels, mid_channels=None):
    """Deterministic synthetic init, already in kernel layout.

    Conv weights (C_out, C_in, 3) are packed tap-major along the CONTRACTION
    dim: (C_out, 3*C_in) bf16 (column = k*C_in + c).  bias/gamma/beta are
    packed into one (3, C, 1) f32 slab per layer.
    """
    if not mid_channels:
        mid_channels = out_channels
    k1, k2, k3, k4 = jax.random.split(key, 4)
    w1 = 0.2 * jax.random.normal(k1, (mid_channels, in_channels, 3), jnp.float32)
    b1 = 0.1 * jax.random.normal(k2, (mid_channels,), jnp.float32)
    w2 = 0.2 * jax.random.normal(k3, (out_channels, mid_channels, 3), jnp.float32)
    b2 = 0.1 * jax.random.normal(k4, (out_channels,), jnp.float32)

    def pack_w(w):
        co, ci, _ = w.shape
        return (jnp.transpose(w, (0, 2, 1))          # (co, 3, ci) tap-major cols
                .reshape(co, 3 * ci).astype(jnp.bfloat16))

    def pack_p(bias, c):
        return jnp.stack(
            [bias, jnp.ones((c,), jnp.float32), jnp.zeros((c,), jnp.float32)],
            axis=0)[:, :, None]                       # (3, c, 1): bias, gamma, beta

    return {
        "w1": pack_w(w1), "p1": pack_p(b1, mid_channels),
        "w2": pack_w(w2), "p2": pack_p(b2, out_channels),
    }


def double_conv_ref(x, mask, params):
    """Pure-JAX reference mirroring the PyTorch forward (and the kernel's
    bf16-operand / f32-accumulate matmul precision)."""
    L = x.shape[-1]

    def conv(xin, w_packed, bias):
        co = bias.shape[0]
        ci = xin.shape[1]
        w3 = w_packed.reshape(co, 3, ci)                         # bf16 taps
        xp = jnp.pad(xin.astype(jnp.bfloat16), ((0, 0), (0, 0), (1, 1)))
        y = sum(jnp.einsum("oc,ncl->nol", w3[:, k, :], xp[:, :, k:k + L],
                           preferred_element_type=jnp.float32)
                for k in range(3))
        return y + bias[None, :, None]

    def ln(y, gamma, beta):
        c = y.shape[1]
        mean = jnp.mean(y, axis=1, keepdims=True)
        var = jnp.sum((y - mean) ** 2, axis=1, keepdims=True) / (c - 1)
        std = jnp.sqrt(var)
        return (gamma[None, :, None] * (y - mean) / (std + _EPS)
                + beta[None, :, None])

    p1, p2 = params["p1"], params["p2"]
    b1, g1, be1 = p1[0, :, 0], p1[1, :, 0], p1[2, :, 0]
    b2, g2, be2 = p2[0, :, 0], p2[1, :, 0], p2[2, :, 0]

    h = conv(x, params["w1"], b1)
    h = ln(h, g1, be1)
    h = _gelu_exact(h) * mask
    h = conv(h, params["w2"], b2)
    h = ln(h, g2, be2)
    h = _gelu_exact(h) * mask
    return h


if __name__ == "__main__":
    # Small shapes consistent with the module; L=96 exercises the pad-to-128 path.
    N, C_IN, C_MID, C_OUT, L = 2, 4, 8, 8, 96

    key = jax.random.PRNGKey(0)
    kx, km, kp = jax.random.split(key, 3)
    x = jax.random.normal(kx, (N, C_IN, L), jnp.float32)
    mask = (jax.random.uniform(km, (N, 1, L)) > 0.25).astype(jnp.float32)
    params = make_params(kp, C_IN, C_OUT, C_MID)

    out = jax.block_until_ready(double_conv_pallas(x, mask, params))
    ref = jax.block_until_ready(double_conv_ref(x, mask, params))

    assert out.shape == (N, C_OUT, L), out.shape
    max_err = float(jnp.max(jnp.abs(out - ref)))
    assert jnp.allclose(out, ref, atol=2e-2, rtol=2e-2), max_err

    print("KERNEL_OK")
</pallas_src>

<mosaic_0001>
module attributes {stable_mosaic.version = 11 : i64} {
  func.func @_double_conv_kernel(%arg0: i32, %arg1: memref<4x256xbf16, #tpu.memory_space<vmem>>, %arg2: memref<1x256xf32, #tpu.memory_space<vmem>>, %arg3: memref<2x256xbf16, #tpu.memory_space<vmem>>, %arg4: memref<8x12xbf16, #tpu.memory_space<vmem>>, %arg5: memref<3x8x1xf32, #tpu.memory_space<vmem>>, %arg6: memref<8x24xbf16, #tpu.memory_space<vmem>>, %arg7: memref<3x8x1xf32, #tpu.memory_space<vmem>>, %arg8: memref<8x256xf32, #tpu.memory_space<vmem>>) attributes {dimension_semantics = [#tpu.dimension_semantics<parallel>], iteration_bounds = array<i64: 1>, scalar_prefetch = 0 : i64, scratch_operands = 0 : i64, tpu.core_type = #tpu.core_type<tc>, window_params = [{transform_indices = @transform_0, window_bounds = array<i64: 4, 256>}, {transform_indices = @transform_1, window_bounds = array<i64: 1, 256>}, {pipeline_mode = #tpu.pipeline_mode<synchronous>, transform_indices = @transform_2, window_bounds = array<i64: 2, 256>}, {pipeline_mode = #tpu.pipeline_mode<synchronous>, transform_indices = @transform_3, window_bounds = array<i64: 8, 12>}, {pipeline_mode = #tpu.pipeline_mode<synchronous>, transform_indices = @transform_4, window_bounds = array<i64: 3, 8, 1>}, {pipeline_mode = #tpu.pipeline_mode<synchronous>, transform_indices = @transform_5, window_bounds = array<i64: 8, 24>}, {pipeline_mode = #tpu.pipeline_mode<synchronous>, transform_indices = @transform_6, window_bounds = array<i64: 3, 8, 1>}, {transform_indices = @transform_7, window_bounds = array<i64: 8, 256>}]} {
    %c0 = arith.constant 0 : index
    %c0_0 = arith.constant 0 : index
    %0 = vector.load %arg3[%c0, %c0_0] : memref<2x256xbf16, #tpu.memory_space<vmem>>, vector<1x256xbf16>
    %c1 = arith.constant 1 : index
    %c0_1 = arith.constant 0 : index
    %1 = vector.load %arg3[%c1, %c0_1] : memref<2x256xbf16, #tpu.memory_space<vmem>>, vector<1x256xbf16>
    %c0_2 = arith.constant 0 : index
    %c0_3 = arith.constant 0 : index
    %2 = vector.load %arg2[%c0_2, %c0_3] : memref<1x256xf32, #tpu.memory_space<vmem>>, vector<1x256xf32>
    %c0_4 = arith.constant 0 : index
    %c0_5 = arith.constant 0 : index
    %c0_6 = arith.constant 0 : index
    %3 = vector.load %arg5[%c0_4, %c0_5, %c0_6] : memref<3x8x1xf32, #tpu.memory_space<vmem>>, vector<1x8x1xf32>
    %4 = vector.shape_cast %3 : vector<1x8x1xf32> to vector<8x1xf32>
    %c1_7 = arith.constant 1 : index
    %c0_8 = arith.constant 0 : index
    %c0_9 = arith.constant 0 : index
    %5 = vector.load %arg5[%c1_7, %c0_8, %c0_9] : memref<3x8x1xf32, #tpu.memory_space<vmem>>, vector<1x8x1xf32>
    %6 = vector.shape_cast %5 : vector<1x8x1xf32> to vector<8x1xf32>
    %c2 = arith.constant 2 : index
    %c0_10 = arith.constant 0 : index
    %c0_11 = arith.constant 0 : index
    %7 = vector.load %arg5[%c2, %c0_10, %c0_11] : memref<3x8x1xf32, #tpu.memory_space<vmem>>, vector<1x8x1xf32>
    %8 = vector.shape_cast %7 : vector<1x8x1xf32> to vector<8x1xf32>
    %c0_12 = arith.constant 0 : index
    %c0_13 = arith.constant 0 : index
    %c0_14 = arith.constant 0 : index
    %9 = vector.load %arg7[%c0_12, %c0_13, %c0_14] : memref<3x8x1xf32, #tpu.memory_space<vmem>>, vector<1x8x1xf32>
    %10 = vector.shape_cast %9 : vector<1x8x1xf32> to vector<8x1xf32>
    %c1_15 = arith.constant 1 : index
    %c0_16 = arith.constant 0 : index
    %c0_17 = arith.constant 0 : index
    %11 = vector.load %arg7[%c1_15, %c0_16, %c0_17] : memref<3x8x1xf32, #tpu.memory_space<vmem>>, vector<1x8x1xf32>
    %12 = vector.shape_cast %11 : vector<1x8x1xf32> to vector<8x1xf32>
    %c2_18 = arith.constant 2 : index
    %c0_19 = arith.constant 0 : index
    %c0_20 = arith.constant 0 : index
    %13 = vector.load %arg7[%c2_18, %c0_19, %c0_20] : memref<3x8x1xf32, #tpu.memory_space<vmem>>, vector<1x8x1xf32>
    %14 = vector.shape_cast %13 : vector<1x8x1xf32> to vector<8x1xf32>
    %c0_21 = arith.constant 0 : index
    %c0_22 = arith.constant 0 : index
    %15 = vector.load %arg1[%c0_21, %c0_22] : memref<4x256xbf16, #tpu.memory_space<vmem>>, vector<4x256xbf16>
    %c0_23 = arith.constant 0 : index
    %c0_24 = arith.constant 0 : index
    %16 = vector.load %arg4[%c0_23, %c0_24] : memref<8x12xbf16, #tpu.memory_space<vmem>>, vector<8x12xbf16>
    %17 = vector.broadcast %1 : vector<1x256xbf16> to vector<4x256xbf16>
    %18 = arith.mulf %15, %17 : vector<4x256xbf16>
    %19 = vector.extract_strided_slice %18 {offsets = [0, 255], sizes = [4, 1], strides = [1, 1]} : vector<4x256xbf16> to vector<4x1xbf16>
    %20 = vector.extract_strided_slice %18 {offsets = [0, 0], sizes = [4, 255], strides = [1, 1]} : vector<4x256xbf16> to vector<4x255xbf16>
    %21 = tpu.concatenate %19, %20 in 1 : vector<4x1xbf16>, vector<4x255xbf16> -> vector<4x256xbf16>
    %22 = vector.broadcast %0 : vector<1x256xbf16> to vector<4x256xbf16>
    %23 = arith.mulf %15, %22 : vector<4x256xbf16>
    %24 = vector.extract_strided_slice %23 {offsets = [0, 1], sizes = [4, 255], strides = [1, 1]} : vector<4x256xbf16> to vector<4x255xbf16>
    %25 = vector.extract_strided_slice %23 {offsets = [0, 0], sizes = [4, 1], strides = [1, 1]} : vector<4x256xbf16> to vector<4x1xbf16>
    %26 = tpu.concatenate %24, %25 in 1 : vector<4x255xbf16>, vector<4x1xbf16> -> vector<4x256xbf16>
    %27 = tpu.concatenate %21, %15, %26 in 0 : vector<4x256xbf16>, vector<4x256xbf16>, vector<4x256xbf16> -> vector<12x256xbf16>
    %cst = arith.constant dense<0.000000e+00> : vector<8x256xf32>
    %28 = tpu.matmul %16, %27, %cst {dimension_numbers = #tpu.dot_dimension_numbers<[1], [0], [0], [1], [0, 0, 1, 1], [], []>} : vector<8x12xbf16>, vector<12x256xbf16>, vector<8x256xf32> -> vector<8x256xf32>
    %29 = vector.broadcast %4 : vector<8x1xf32> to vector<8x256xf32>
    %30 = arith.addf %28, %29 : vector<8x256xf32>
    %cst_25 = arith.constant dense<0.000000e+00> : vector<256xf32>
    %31 = vector.multi_reduction <add>, %30, %cst_25 [0] : vector<8x256xf32> to vector<256xf32>
    %32 = vector.shape_cast %31 : vector<256xf32> to vector<1x256xf32>
    %cst_26 = arith.constant 8.000000e+00 : f32
    %33 = vector.broadcast %cst_26 : f32 to vector<1x256xf32>
    %34 = arith.divf %32, %33 : vector<1x256xf32>
    %35 = vector.broadcast %34 : vector<1x256xf32> to vector<8x256xf32>
    %36 = arith.subf %30, %35 : vector<8x256xf32>
    %37 = arith.mulf %36, %36 : vector<8x256xf32>
    %cst_27 = arith.constant dense<0.000000e+00> : vector<256xf32>
    %38 = vector.multi_reduction <add>, %37, %cst_27 [0] : vector<8x256xf32> to vector<256xf32>
    %39 = vector.shape_cast %38 : vector<256xf32> to vector<1x256xf32>
    %cst_28 = arith.constant 7.000000e+00 : f32
    %40 = vector.broadcast %cst_28 : f32 to vector<1x256xf32>
    %41 = arith.divf %39, %40 : vector<1x256xf32>
    %42 = math.sqrt %41 : vector<1x256xf32>
    %cst_29 = arith.constant 9.99999997E-7 : f32
    %43 = vector.broadcast %cst_29 : f32 to vector<1x256xf32>
    %44 = arith.addf %42, %43 : vector<1x256xf32>
    %cst_30 = arith.constant 1.000000e+00 : f32
    %45 = vector.broadcast %cst_30 : f32 to vector<1x256xf32>
    %46 = arith.divf %45, %44 : vector<1x256xf32>
    %47 = vector.broadcast %46 : vector<1x256xf32> to vector<8x256xf32>
    %48 = arith.mulf %36, %47 : vector<8x256xf32>
    %49 = vector.broadcast %6 : vector<8x1xf32> to vector<8x256xf32>
    %50 = arith.mulf %49, %48 : vector<8x256xf32>
    %51 = vector.broadcast %8 : vector<8x1xf32> to vector<8x256xf32>
    %52 = arith.addf %50, %51 : vector<8x256xf32>
    %cst_31 = arith.constant 5.000000e-01 : f32
    %53 = vector.broadcast %cst_31 : f32 to vector<8x256xf32>
    %54 = arith.mulf %53, %52 : vector<8x256xf32>
    %cst_32 = arith.constant 0.707106769 : f32
    %55 = vector.broadcast %cst_32 : f32 to vector<8x256xf32>
    %56 = arith.mulf %52, %55 : vector<8x256xf32>
    %57 = math.erf %56 : vector<8x256xf32>
    %cst_33 = arith.constant 1.000000e+00 : f32
    %58 = vector.broadcast %cst_33 : f32 to vector<8x256xf32>
    %59 = arith.addf %58, %57 : vector<8x256xf32>
    %60 = arith.mulf %54, %59 : vector<8x256xf32>
    %61 = vector.broadcast %2 : vector<1x256xf32> to vector<8x256xf32>
    %62 = arith.mulf %60, %61 : vector<8x256xf32>
    %63 = arith.truncf %62 : vector<8x256xf32> to vector<8x256xbf16>
    %c0_34 = arith.constant 0 : index
    %c0_35 = arith.constant 0 : index
    %64 = vector.load %arg6[%c0_34, %c0_35] : memref<8x24xbf16, #tpu.memory_space<vmem>>, vector<8x24xbf16>
    %65 = vector.broadcast %1 : vector<1x256xbf16> to vector<8x256xbf16>
    %66 = arith.mulf %63, %65 : vector<8x256xbf16>
    %67 = vector.extract_strided_slice %66 {offsets = [0, 255], sizes = [8, 1], strides = [1, 1]} : vector<8x256xbf16> to vector<8x1xbf16>
    %68 = vector.extract_strided_slice %66 {offsets = [0, 0], sizes = [8, 255], strides = [1, 1]} : vector<8x256xbf16> to vector<8x255xbf16>
    %69 = tpu.concatenate %67, %68 in 1 : vector<8x1xbf16>, vector<8x255xbf16> -> vector<8x256xbf16>
    %70 = vector.broadcast %0 : vector<1x256xbf16> to vector<8x256xbf16>
    %71 = arith.mulf %63, %70 : vector<8x256xbf16>
    %72 = vector.extract_strided_slice %71 {offsets = [0, 1], sizes = [8, 255], strides = [1, 1]} : vector<8x256xbf16> to vector<8x255xbf16>
    %73 = vector.extract_strided_slice %71 {offsets = [0, 0], sizes = [8, 1], strides = [1, 1]} : vector<8x256xbf16> to vector<8x1xbf16>
    %74 = tpu.concatenate %72, %73 in 1 : vector<8x255xbf16>, vector<8x1xbf16> -> vector<8x256xbf16>
    %75 = tpu.concatenate %69, %63, %74 in 0 : vector<8x256xbf16>, vector<8x256xbf16>, vector<8x256xbf16> -> vector<24x256xbf16>
    %cst_36 = arith.constant dense<0.000000e+00> : vector<8x256xf32>
    %76 = tpu.matmul %64, %75, %cst_36 {dimension_numbers = #tpu.dot_dimension_numbers<[1], [0], [0], [1], [0, 0, 1, 1], [], []>} : vector<8x24xbf16>, vector<24x256xbf16>, vector<8x256xf32> -> vector<8x256xf32>
    %77 = vector.broadcast %10 : vector<8x1xf32> to vector<8x256xf32>
    %78 = arith.addf %76, %77 : vector<8x256xf32>
    %cst_37 = arith.constant dense<0.000000e+00> : vector<256xf32>
    %79 = vector.multi_reduction <add>, %78, %cst_37 [0] : vector<8x256xf32> to vector<256xf32>
    %80 = vector.shape_cast %79 : vector<256xf32> to vector<1x256xf32>
    %cst_38 = arith.constant 8.000000e+00 : f32
    %81 = vector.broadcast %cst_38 : f32 to vector<1x256xf32>
    %82 = arith.divf %80, %81 : vector<1x256xf32>
    %83 = vector.broadcast %82 : vector<1x256xf32> to vector<8x256xf32>
    %84 = arith.subf %78, %83 : vector<8x256xf32>
    %85 = arith.mulf %84, %84 : vector<8x256xf32>
    %cst_39 = arith.constant dense<0.000000e+00> : vector<256xf32>
    %86 = vector.multi_reduction <add>, %85, %cst_39 [0] : vector<8x256xf32> to vector<256xf32>
    %87 = vector.shape_cast %86 : vector<256xf32> to vector<1x256xf32>
    %cst_40 = arith.constant 7.000000e+00 : f32
    %88 = vector.broadcast %cst_40 : f32 to vector<1x256xf32>
    %89 = arith.divf %87, %88 : vector<1x256xf32>
    %90 = math.sqrt %89 : vector<1x256xf32>
    %cst_41 = arith.constant 9.99999997E-7 : f32
    %91 = vector.broadcast %cst_41 : f32 to vector<1x256xf32>
    %92 = arith.addf %90, %91 : vector<1x256xf32>
    %cst_42 = arith.constant 1.000000e+00 : f32
    %93 = vector.broadcast %cst_42 : f32 to vector<1x256xf32>
    %94 = arith.divf %93, %92 : vector<1x256xf32>
    %95 = vector.broadcast %94 : vector<1x256xf32> to vector<8x256xf32>
    %96 = arith.mulf %84, %95 : vector<8x256xf32>
    %97 = vector.broadcast %12 : vector<8x1xf32> to vector<8x256xf32>
    %98 = arith.mulf %97, %96 : vector<8x256xf32>
    %99 = vector.broadcast %14 : vector<8x1xf32> to vector<8x256xf32>
    %100 = arith.addf %98, %99 : vector<8x256xf32>
    %cst_43 = arith.constant 5.000000e-01 : f32
    %101 = vector.broadcast %cst_43 : f32 to vector<8x256xf32>
    %102 = arith.mulf %101, %100 : vector<8x256xf32>
    %cst_44 = arith.constant 0.707106769 : f32
    %103 = vector.broadcast %cst_44 : f32 to vector<8x256xf32>
    %104 = arith.mulf %100, %103 : vector<8x256xf32>
    %105 = math.erf %104 : vector<8x256xf32>
    %cst_45 = arith.constant 1.000000e+00 : f32
    %106 = vector.broadcast %cst_45 : f32 to vector<8x256xf32>
    %107 = arith.addf %106, %105 : vector<8x256xf32>
    %108 = arith.mulf %102, %107 : vector<8x256xf32>
    %109 = vector.broadcast %2 : vector<1x256xf32> to vector<8x256xf32>
    %110 = arith.mulf %108, %109 : vector<8x256xf32>
    %c0_46 = arith.constant 0 : index
    %c0_47 = arith.constant 0 : index
    %111 = vector.load %arg8[%c0_46, %c0_47] : memref<8x256xf32, #tpu.memory_space<vmem>>, vector<8x256xf32>
    tpu.vector_store %arg8[%c0_46, %c0_47], %110 {strides = array<i32>} : memref<8x256xf32, #tpu.memory_space<vmem>>, vector<8x256xf32>,
    return
  }
  func.func @transform_0(%arg0: i32) -> (i32, i32) {
    %c0_i32 = arith.constant 0 : i32
    %c0_i32_0 = arith.constant 0 : i32
    return %c0_i32, %arg0 : i32, i32
  }
  func.func @transform_1(%arg0: i32) -> (i32, i32) {
    %c0_i32 = arith.constant 0 : i32
    %c0_i32_0 = arith.constant 0 : i32
    return %c0_i32, %arg0 : i32, i32
  }
  func.func @transform_2(%arg0: i32) -> (i32, i32) {
    %c0_i32 = arith.constant 0 : i32
    %c0_i32_0 = arith.constant 0 : i32
    %c0_i32_1 = arith.constant 0 : i32
    return %c0_i32, %c0_i32_0 : i32, i32
  }
  func.func @transform_3(%arg0: i32) -> (i32, i32) {
    %c0_i32 = arith.constant 0 : i32
    %c0_i32_0 = arith.constant 0 : i32
    %c0_i32_1 = arith.constant 0 : i32
    return %c0_i32, %c0_i32_0 : i32, i32
  }
  func.func @transform_4(%arg0: i32) -> (i32, i32, i32) {
    %c0_i32 = arith.constant 0 : i32
    %c0_i32_0 = arith.constant 0 : i32
    %c0_i32_1 = arith.constant 0 : i32
    %c0_i32_2 = arith.constant 0 : i32
    return %c0_i32, %c0_i32_0, %c0_i32_1 : i32, i32, i32
  }
  func.func @transform_5(%arg0: i32) -> (i32, i32) {
    %c0_i32 = arith.constant 0 : i32
    %c0_i32_0 = arith.constant 0 : i32
    %c0_i32_1 = arith.constant 0 : i32
    return %c0_i32, %c0_i32_0 : i32, i32
  }
  func.func @transform_6(%arg0: i32) -> (i32, i32, i32) {
    %c0_i32 = arith.constant 0 : i32
    %c0_i32_0 = arith.constant 0 : i32
    %c0_i32_1 = arith.constant 0 : i32
    %c0_i32_2 = arith.constant 0 : i32
    return %c0_i32, %c0_i32_0, %c0_i32_1 : i32, i32, i32
  }
  func.func @transform_7(%arg0: i32) -> (i32, i32) {
    %c0_i32 = arith.constant 0 : i32
    %c0_i32_0 = arith.constant 0 : i32
    return %c0_i32, %arg0 : i32, i32
  }
}

</mosaic_0001>

<llo_original>
// kernel: tpu_custom_call.1
$region0: #{tpu_custom_call.1}
  #allocation0 [shape = 'u32[]', space=smem, size = 0x4, offset = 0x4, fixed_abs, tag = 'smem constant byte address 0x4 - core index']
  #allocation1 [shape = 'u32[72,128]{1,0:T(1,128)}', space=vmem, size = 0x9000, scoped, tag = 'internal scratch']
  %s0 = inlined_call_operand.vmem [shape: bf16[4,256], index: 0, kind: input, shape index: {}]
  %s1 = inlined_call_operand.vmem [shape: f32[1,256], index: 1, kind: input, shape index: {}]
  %s2 = inlined_call_operand.vmem [shape: bf16[2,256], index: 2, kind: input, shape index: {}]
  %s3 = inlined_call_operand.vmem [shape: bf16[8,12], index: 3, kind: input, shape index: {}]
  %s4 = inlined_call_operand.vmem [shape: f32[3,8,1], index: 4, kind: input, shape index: {}]
  %s5 = inlined_call_operand.vmem [shape: bf16[8,24], index: 5, kind: input, shape index: {}]
  %s6 = inlined_call_operand.vmem [shape: f32[3,8,1], index: 6, kind: input, shape index: {}]
  %s7 = inlined_call_operand.hbm [shape: f32[8,256], index: 7, kind: output, shape index: {}]
  %s8 = sld [smem:[#allocation0]]
  $region38: #{tpu_custom_call.1} parent=0
    _
  %s10 = ssub.s32 1, %s8
  %s11 = scalar_select 0, %s10, %s8
  $region1: #{tpu_custom_call.1} parent=0
    #allocation2 [shape = 'u8[8192]{0}', space=vmem, size = 0x2000, scoped, tag = 'output window, operand 0, single buffered']
    #allocation3 [shape = 's32[1]{0}', space=sflag, size = 0x4, scoped, tag = 'scoped memory for tpu_custom_call.1']
    %12 = vsyncpa [#allocation3], 0
    // Predicated region
    $region2: #{tpu_custom_call.1} parent=1 // pred_check
      _
    $region3: #{tpu_custom_call.1} parent=1 // pred_check_branch
      %14 = sbr.rel (0) target = $region5
    $region4: #{tpu_custom_call.1} parent=1 // pred_region
      _
    $region5: #{tpu_custom_call.1} parent=1 // pred_fallthru
      _
    // Predicated region
    $region6: #{tpu_custom_call.1} parent=1 // pred_check
      _
    $region7: #{tpu_custom_call.1} parent=1 // pred_check_branch
      %16 = sbr.rel (0) target = $region9
    $region8: #{tpu_custom_call.1} parent=1 // pred_region
      _
    $region9: #{tpu_custom_call.1} parent=1 // pred_fallthru
      _
    // Predicated region
    $region10: #{tpu_custom_call.1} parent=1 // pred_check
      _
    $region11: #{tpu_custom_call.1} parent=1 // pred_check_branch
      %18 = sbr.rel (0) target = $region13
    $region12: #{tpu_custom_call.1} parent=1 // pred_region
      _
    $region13: #{tpu_custom_call.1} parent=1 // pred_fallthru
      _
    // Predicated region
    $region14: #{tpu_custom_call.1} parent=1 // pred_check
      _
    $region15: #{tpu_custom_call.1} parent=1 // pred_check_branch
      %20 = sbr.rel (0) target = $region17
    $region16: #{tpu_custom_call.1} parent=1 // pred_region
      _
    $region17: #{tpu_custom_call.1} parent=1 // pred_fallthru
      _
    // Predicated region
    $region18: #{tpu_custom_call.1} parent=1 // pred_check
      _
    $region19: #{tpu_custom_call.1} parent=1 // pred_check_branch
      %22 = sbr.rel (0) target = $region21
    $region20: #{tpu_custom_call.1} parent=1 // pred_region
      _
    $region21: #{tpu_custom_call.1} parent=1 // pred_fallthru
      _
    // Predicated region
    $region22: #{tpu_custom_call.1} parent=1 // pred_check
      _
    $region23: #{tpu_custom_call.1} parent=1 // pred_check_branch
      %24 = sbr.rel (0) target = $region25
    $region24: #{tpu_custom_call.1} parent=1 // pred_region
      _
    $region25: #{tpu_custom_call.1} parent=1 // pred_fallthru
      _
    // Predicated region
    $region26: #{tpu_custom_call.1} parent=1 // pred_check
      _
    $region27: #{tpu_custom_call.1} parent=1 // pred_check_branch
      %26 = sbr.rel (0) target = $region29
    $region28: #{tpu_custom_call.1} parent=1 // pred_region
      _
    $region29: #{tpu_custom_call.1} parent=1 // pred_fallthru
      _
    %v28 = vld [vmem:[%s2] sm:$0x3]
    %v29 = vld [vmem:[%s1] sm:$0x3]
    %v30 = vld [vmem:[%s4] sm:$0xff]
    %s31 = scalar_lea.vmem %s4, 8
    %v32 = vld [vmem:[%s31] sm:$0xff]
    %s33 = scalar_lea.vmem %s4, 16
    %v34 = vld [vmem:[%s33] sm:$0xff]
    %v35 = vld [vmem:[%s6] sm:$0xff]
    %s36 = scalar_lea.vmem %s6, 8
    %v37 = vld [vmem:[%s36] sm:$0xff]
    %s38 = scalar_lea.vmem %s6, 16
    %v39 = vld [vmem:[%s38] sm:$0xff]
    %v40 = vld [vmem:[%s0] sm:$0xf]
    %v41 = vld [vmem:[%s3] sm:$0xf]
    %43 = vst [vmem:[#allocation1] ss:$9 sm:$0xff] %v28
    %v44 = vld [vmem:[#allocation1] sm:$0xff]
    %v45 = vld [vmem:[#allocation1 + $0x9] sm:$0xff]
    %v46 = vshrl.u32 %v44, 16
    %v47 = vpack.i.b16 %v46, %v46
    %v49 = vperm.slane %v47, 0
    %v50 = vshrl.u32 %v45, 16
    %v51 = vpack.i.b16 %v50, %v50
    %v53 = vperm.slane %v51, 0
    %v54 = vunpack.c.l.bf16 %v40
    %v55 = vunpack.c.l.bf16 %v49
    %v56 = vunpack.c.l.bf16 %v53
    %v59 = vrot.slane %v56, 4
    %vm60 = vcmask 1043456
    %v61 = vsel %vm60, %v55, %v59
    %v63 = vmul.f32 %v54, %v61
    %65 = vst [vmem:[#allocation1] ss:$2 sm:$0xff] %v63
    %v66 = vld.sshfl [vmem:[#allocation1] sm:$0xff pattern:$0x75316420]
    %v67 = vld.sshfl [vmem:[#allocation1 + $0x8] sm:$0xff pattern:$0x75316420]
    %v70 = vpack.c.bf16 %v67, %v66
    %v72 = vunpack.c.h.b16 %v70
    %v73 = vpack.c.b16 %v72, %v72
    %74 = vrot.lane.b32.xlu0 %v73, 1
    %v75 = vpop.permute.xlu0 %74
    %v76 = vunpack.c.l.b16 %v70
    %v77 = vpack.c.b16 %v76, %v76
    %78 = vrot.lane.b32.xlu0 %v77, 1
    %v79 = vpop.permute.xlu0 %78
    %vm80 = vcmask 7168
    %v81 = vsel %vm80, %v79, %v75
    %vm82 = vcmask 7168
    %v85 = vsel %vm82, %v75, %v79
    %86 = vst [vmem:[#allocation1] ss:$9 sm:$0xff] %v28
    %v87 = vld [vmem:[#allocation1] sm:$0xff]
    %v88 = vld [vmem:[#allocation1 + $0x9] sm:$0xff]
    %v89 = vpack.i.b16 %v87, %v87
    %v91 = vperm.slane %v89, 0
    %v92 = vpack.i.b16 %v88, %v88
    %v94 = vperm.slane %v92, 0
    %v95 = vunpack.c.l.bf16 %v91
    %v96 = vunpack.c.l.bf16 %v94
    %v99 = vrot.slane %v96, 4
    %v100 = vsel %vm60, %v95, %v99
    %v102 = vmul.f32 %v54, %v100
    %104 = vst [vmem:[#allocation1] ss:$2 sm:$0xff] %v102
    %v105 = vld.sshfl [vmem:[#allocation1] sm:$0xff pattern:$0x75316420]
    %v106 = vld.sshfl [vmem:[#allocation1 + $0x8] sm:$0xff pattern:$0x75316420]
    %v109 = vpack.c.bf16 %v106, %v105
    %v111 = vunpack.c.l.b16 %v109
    %v112 = vunpack.c.h.b16 %v109
    %v113 = vpack.c.b16 %v111, %v111
    %v114 = vpack.c.b16 %v112, %v112
    %115 = vrot.lane.b32.xlu0 %v113, 127
    %v116 = vpop.permute.xlu0 %115
    %117 = vrot.lane.b32.xlu0 %v114, 127
    %v118 = vpop.permute.xlu0 %117
    %vm119 = vcmask 1039360
    %v120 = vsel %vm119, %v116, %v118
    %vm121 = vcmask 1039360
    %v124 = vsel %vm121, %v118, %v116
    %s126 = scalar_lea.vmem [#allocation1], 1
    %127 = vst [vmem:[%s126] ss:$4 sm:$0xff] %v40
    %v128 = vld.sshfl [vmem:[#allocation1] sm:$0xff pattern:$0x73625140]
    %v129 = vld.sshfl [vmem:[#allocation1 + $0x8] sm:$0xff pattern:$0x73625140]
    %v131 = vrot.slane %v120, 4
    %v132 = vrot.slane %v124, 4
    %vm133 = vcmask 1041408
    %v134 = vsel %vm133, %v85, %v128
    %v136 = vsel %vm133, %v81, %v129
    %v138 = vsel %vm60, %v134, %v131
    %v140 = vsel %vm60, %v136, %v132
    %142 = vset.pattern.permute.xlu0 0
    %143 = vperm.xlu0 %142, %v30
    %v144 = vpop.permute.xlu0 %143
    %vm146 = vcmask 97280
    %v148 = vsel %vm146, %v41, 0
    %vm150 = vcmask 1045504
    %v151 = vsel %vm150, %v138, 0
    %v153 = vsel %vm150, %v140, 0
    %155 = vmatpush.bf16.msra.mxu0 0
    %156 = vmatpush.bf16.msra.mxu0 0
    %157 = vmatpush.bf16.msra.mxu0 0
    %158 = vmatpush.bf16.msra.mxu0 0
    %159 = vmatpush.bf16.msra.mxu0 0
    %160 = vmatpush.bf16.msra.mxu0 0
    %161 = vmatpush.bf16.msra.mxu0 0
    %162 = vmatpush.bf16.msra.mxu0 %v151
    %163 = vmatmul.bf16.gmra.mxu0 %v148
    %v164 = vpop.f32.mrf.mxu0
    %v165 = vadd.f32 %v144, %v164
    %v166 = vpop.f32.mrf.mxu0
    %167 = vdwg.mxu0
    %168 = vmatpush.bf16.msra.mxu0 0
    %169 = vmatpush.bf16.msra.mxu0 0
    %170 = vmatpush.bf16.msra.mxu0 0
    %171 = vmatpush.bf16.msra.mxu0 0
    %172 = vmatpush.bf16.msra.mxu0 0
    %173 = vmatpush.bf16.msra.mxu0 0
    %174 = vmatpush.bf16.msra.mxu0 0
    %175 = vmatpush.bf16.msra.mxu0 %v153
    %176 = vmatmul.bf16.gmra.mxu0 %v148
    %v177 = vpop.f32.mrf.mxu0
    %v178 = vadd.f32 %v144, %v177
    %v179 = vpop.f32.mrf.mxu0
    %180 = vdwg.mxu0
    %v181 = vrot.slane %v165, 4
    %v182 = vadd.f32 %v165, %v181
    %v183 = vrot.slane %v182, 2
    %v184 = vadd.f32 %v182, %v183
    %v185 = vrot.slane %v184, 1
    %v186 = vadd.f32 %v184, %v185
    %v187 = vrot.slane %v178, 4
    %v188 = vadd.f32 %v178, %v187
    %v189 = vrot.slane %v188, 2
    %v190 = vadd.f32 %v188, %v189
    %v191 = vrot.slane %v190, 1
    %v192 = vadd.f32 %v190, %v191
    %v193 = vrcp.pop 8.0
    %v194 = vmul.f32 8.0, %v193
    %v195 = vsub.f32 1.0, %v194
    %v196 = vmul.f32 %v193, %v195
    %v197 = vadd.f32 %v193, %v196
    %vm198 = vweird.f32 %v193
    %v199 = vsel %vm198, %v193, %v197
    %v200 = vmul.f32 %v186, %v199
    %v201 = vmul.f32 %v192, %v199
    %v202 = vsub.f32 %v165, %v200
    %v203 = vsub.f32 %v178, %v201
    %v204 = vmul.f32 %v202, %v202
    %v205 = vmul.f32 %v203, %v203
    %v206 = vrot.slane %v204, 4
    %v207 = vadd.f32 %v204, %v206
    %v208 = vrot.slane %v207, 2
    %v209 = vadd.f32 %v207, %v208
    %v210 = vrot.slane %v209, 1
    %v211 = vadd.f32 %v209, %v210
    %v212 = vrot.slane %v205, 4
    %v213 = vadd.f32 %v205, %v212
    %v214 = vrot.slane %v213, 2
    %v215 = vadd.f32 %v213, %v214
    %v216 = vrot.slane %v215, 1
    %v217 = vadd.f32 %v215, %v216
    %v218 = vrcp.pop 7.0
    %v219 = vmul.f32 7.0, %v218
    %v220 = vsub.f32 1.0, %v219
    %v221 = vmul.f32 %v218, %v220
    %v222 = vadd.f32 %v218, %v221
    %vm223 = vweird.f32 %v218
    %v224 = vsel %vm223, %v218, %v222
    %v225 = vmul.f32 %v211, %v224
    %v226 = vmul.f32 %v217, %v224
    %v227 = vrsqrt.pop %v225
    %v228 = vmul.f32 %v227, %v225
    %v229 = vmul.f32 %v228, %v227
    %v230 = vmul.f32 0.5, %v229
    %v231 = vsub.f32 1.5, %v230
    %v232 = vmul.f32 %v227, %v231
    %v233 = vmul.f32 %v225, %v232
    %vm234 = vcmp.eq.f32.partialorder %v225, inf
    %v235 = vsel %vm234, %v225, %v233
    %vm236 = vcmp.eq.f32.partialorder %v225, 0.0
    %v237 = vand.u32 %v225, 2147483648
    %v238 = vsel %vm236, %v237, %v235
    %v239 = vrsqrt.pop %v226
    %v240 = vmul.f32 %v239, %v226
    %v241 = vmul.f32 %v240, %v239
    %v242 = vmul.f32 0.5, %v241
    %v243 = vsub.f32 1.5, %v242
    %v244 = vmul.f32 %v239, %v243
    %v245 = vmul.f32 %v226, %v244
    %vm246 = vcmp.eq.f32.partialorder %v226, inf
    %v247 = vsel %vm246, %v226, %v245
    %vm248 = vcmp.eq.f32.partialorder %v226, 0.0
    %v249 = vand.u32 %v226, 2147483648
    %v250 = vsel %vm248, %v249, %v247
    %v251 = vadd.f32 %v238, 1e-06
    %v252 = vadd.f32 %v250, 1e-06
    %v253 = vrcp.pop %v251
    %v254 = vmul.f32 %v251, %v253
    %v255 = vsub.f32 1.0, %v254
    %v256 = vmul.f32 %v253, %v255
    %v257 = vadd.f32 %v253, %v256
    %vm258 = vweird.f32 %v251
    %vm259 = vweird.f32 %v253
    %vm260 = vmor %vm258, %vm259
    %v261 = vsel %vm260, %v253, %v257
    %v262 = vand.u32 2147483647, %v251
    %vm263 = vcmp.eq.f32.partialorder %v262, 8.507059e+37
    %v264 = vand.u32 %v251, 2147483648
    %v265 = vor.u32 1.1754944e-38, %v264
    %v266 = vsel %vm263, %v265, %v261
    %v267 = vmul.f32 1.0, %v266
    %v268 = vrcp.pop %v252
    %v269 = vmul.f32 %v252, %v268
    %v270 = vsub.f32 1.0, %v269
    %v271 = vmul.f32 %v268, %v270
    %v272 = vadd.f32 %v268, %v271
    %vm273 = vweird.f32 %v252
    %vm274 = vweird.f32 %v268
    %vm275 = vmor %vm273, %vm274
    %v276 = vsel %vm275, %v268, %v272
    %v277 = vand.u32 2147483647, %v252
    %vm278 = vcmp.eq.f32.partialorder %v277, 8.507059e+37
    %v279 = vand.u32 %v252, 2147483648
    %v280 = vor.u32 1.1754944e-38, %v279
    %v281 = vsel %vm278, %v280, %v276
    %v282 = vmul.f32 1.0, %v281
    %v283 = vmul.f32 %v202, %v267
    %v284 = vmul.f32 %v203, %v282
    %286 = vset.pattern.permute.xlu0 0
    %287 = vperm.xlu0 %286, %v32
    %v288 = vpop.permute.xlu0 %287
    %v290 = vmul.f32 %v288, %v283
    %v291 = vmul.f32 %v288, %v284
    %293 = vset.pattern.permute.xlu0 0
    %294 = vperm.xlu0 %293, %v34
    %v295 = vpop.permute.xlu0 %294
    %v297 = vadd.f32 %v290, %v295
    %v298 = vadd.f32 %v291, %v295
    %v299 = vmul.f32 %v297, 0.5
    %v300 = vmul.f32 %v298, 0.5
    %v301 = vmul.f32 %v297, 0.70710677
    %v302 = vmul.f32 %v298, 0.70710677
    %v303 = vmul.f32 %v301, %v301
    %v304 = vmin.f32 16.0, %v303
    %v305 = vmul.f32 %v304, 2.1237322e-06
    %v306 = vadd.f32 %v305, 0.00028619796
    %v307 = vmul.f32 %v304, %v306
    %v308 = vadd.f32 %v307, 0.0036580483
    %v309 = vmul.f32 %v304, %v308
    %v310 = vadd.f32 %v309, 0.05243302
    %v311 = vmul.f32 %v304, %v310
    %v312 = vadd.f32 %v311, 0.18741608
    %v313 = vmul.f32 %v304, %v312
    %v314 = vadd.f32 %v313, 1.1283791
    %v315 = vmul.f32 %v301, %v314
    %v316 = vmul.f32 %v304, 3.8918573e-05
    %v317 = vadd.f32 %v316, 0.001143296
    %v318 = vmul.f32 %v304, %v317
    %v319 = vadd.f32 %v318, 0.014752088
    %v320 = vmul.f32 %v304, %v319
    %v321 = vadd.f32 %v320, 0.112945676
    %v322 = vmul.f32 %v304, %v321
    %v323 = vadd.f32 %v322, 0.4994258
    %v324 = vmul.f32 %v304, %v323
    %v325 = vadd.f32 %v324, 1.0
    %v326 = vrcp.pop %v325
    %v327 = vmul.f32 %v325, %v326
    %v328 = vsub.f32 1.0, %v327
    %v329 = vmul.f32 %v326, %v328
    %v330 = vadd.f32 %v326, %v329
    %vm331 = vweird.f32 %v325
    %vm332 = vweird.f32 %v326
    %vm333 = vmor %vm331, %vm332
    %v334 = vsel %vm333, %v326, %v330
    %v335 = vand.u32 2147483647, %v325
    %vm336 = vcmp.eq.f32.partialorder %v335, 8.507059e+37
    %v337 = vand.u32 %v325, 2147483648
    %v338 = vor.u32 1.1754944e-38, %v337
    %v339 = vsel %vm336, %v338, %v334
    %v340 = vmul.f32 %v315, %v339
    %v341 = vmin.f32 %v340, 1.0
    %v342 = vmax.f32 %v341, -1.0
    %v343 = vmul.f32 %v302, %v302
    %v344 = vmin.f32 16.0, %v343
    %v345 = vmul.f32 %v344, 2.1237322e-06
    %v346 = vadd.f32 %v345, 0.00028619796
    %v347 = vmul.f32 %v344, %v346
    %v348 = vadd.f32 %v347, 0.0036580483
    %v349 = vmul.f32 %v344, %v348
    %v350 = vadd.f32 %v349, 0.05243302
    %v351 = vmul.f32 %v344, %v350
    %v352 = vadd.f32 %v351, 0.18741608
    %v353 = vmul.f32 %v344, %v352
    %v354 = vadd.f32 %v353, 1.1283791
    %v355 = vmul.f32 %v302, %v354
    %v356 = vmul.f32 %v344, 3.8918573e-05
    %v357 = vadd.f32 %v356, 0.001143296
    %v358 = vmul.f32 %v344, %v357
    %v359 = vadd.f32 %v358, 0.014752088
    %v360 = vmul.f32 %v344, %v359
    %v361 = vadd.f32 %v360, 0.112945676
    %v362 = vmul.f32 %v344, %v361
    %v363 = vadd.f32 %v362, 0.4994258
    %v364 = vmul.f32 %v344, %v363
    %v365 = vadd.f32 %v364, 1.0
    %v366 = vrcp.pop %v365
    %v367 = vmul.f32 %v365, %v366
    %v368 = vsub.f32 1.0, %v367
    %v369 = vmul.f32 %v366, %v368
    %v370 = vadd.f32 %v366, %v369
    %vm371 = vweird.f32 %v365
    %vm372 = vweird.f32 %v366
    %vm373 = vmor %vm371, %vm372
    %v374 = vsel %vm373, %v366, %v370
    %v375 = vand.u32 2147483647, %v365
    %vm376 = vcmp.eq.f32.partialorder %v375, 8.507059e+37
    %v377 = vand.u32 %v365, 2147483648
    %v378 = vor.u32 1.1754944e-38, %v377
    %v379 = vsel %vm376, %v378, %v374
    %v380 = vmul.f32 %v355, %v379
    %v381 = vmin.f32 %v380, 1.0
    %v382 = vmax.f32 %v381, -1.0
    %v383 = vadd.f32 %v342, 1.0
    %v384 = vadd.f32 %v382, 1.0
    %v385 = vmul.f32 %v299, %v383
    %v386 = vmul.f32 %v300, %v384
    %v388 = vperm.slane %v29, 0
    %v389 = vperm.slane %v29, 1
    %v392 = vmul.f32 %v385, %v388
    %v393 = vmul.f32 %v386, %v389
    %v394 = vpack.c.bf16 %v393, %v392
    %v395 = vld [vmem:[%s5] sm:$0xf]
    %396 = vst [vmem:[#allocation1] ss:$9 sm:$0xff] %v28
    %v397 = vld [vmem:[#allocation1] sm:$0xff]
    %v398 = vld [vmem:[#allocation1 + $0x9] sm:$0xff]
    %v399 = vshrl.u32 %v397, 16
    %v400 = vpack.i.b16 %v399, %v399
    %v402 = vperm.slane %v400, 0
    %v403 = vshrl.u32 %v398, 16
    %v404 = vpack.i.b16 %v403, %v403
    %v406 = vperm.slane %v404, 0
    %v407 = vunpack.c.l.bf16 %v394
    %v408 = vunpack.c.h.bf16 %v394
    %v409 = vunpack.c.l.bf16 %v402
    %v410 = vunpack.c.l.bf16 %v406
    %v411 = vmul.f32 %v407, %v409
    %v412 = vmul.f32 %v408, %v410
    %v413 = vpack.c.bf16 %v412, %v411
    %v415 = vunpack.c.h.b16 %v413
    %v416 = vpack.c.b16 %v415, %v415
    %417 = vrot.lane.b32.xlu0 %v416, 1
    %v418 = vpop.permute.xlu0 %417
    %v419 = vunpack.c.l.b16 %v413
    %v420 = vpack.c.b16 %v419, %v419
    %421 = vrot.lane.b32.xlu0 %v420, 1
    %v422 = vpop.permute.xlu0 %421
    %v423 = vsel %vm80, %v422, %v418
    %v426 = vsel %vm82, %v418, %v422
    %427 = vst [vmem:[#allocation1] ss:$9 sm:$0xff] %v28
    %v428 = vld [vmem:[#allocation1] sm:$0xff]
    %v429 = vld [vmem:[#allocation1 + $0x9] sm:$0xff]
    %v430 = vpack.i.b16 %v428, %v428
    %v432 = vperm.slane %v430, 0
    %v433 = vpack.i.b16 %v429, %v429
    %v435 = vperm.slane %v433, 0
    %v436 = vunpack.c.l.bf16 %v432
    %v437 = vunpack.c.l.bf16 %v435
    %v438 = vmul.f32 %v407, %v436
    %v439 = vmul.f32 %v408, %v437
    %v440 = vpack.c.bf16 %v439, %v438
    %v442 = vunpack.c.l.b16 %v440
    %v443 = vunpack.c.h.b16 %v440
    %v444 = vpack.c.b16 %v442, %v442
    %v445 = vpack.c.b16 %v443, %v443
    %446 = vrot.lane.b32.xlu0 %v444, 127
    %v447 = vpop.permute.xlu0 %446
    %448 = vrot.lane.b32.xlu0 %v445, 127
    %v449 = vpop.permute.xlu0 %448
    %v450 = vsel %vm119, %v447, %v449
    %v453 = vsel %vm121, %v449, %v447
    %v455 = vunpack.c.l.b16 %v394
    %v456 = vunpack.c.h.b16 %v394
    %v457 = vpack.c.b16 %v455, %v455
    %v458 = vpack.c.b16 %v456, %v456
    %v460 = vsel %vm60, %v426, %v457
    %v464 = vsel %vm60, %v423, %v458
    %467 = vset.pattern.permute.xlu0 0
    %468 = vperm.xlu0 %467, %v35
    %v469 = vpop.permute.xlu0 %468
    %vm471 = vcmask 195584
    %v473 = vsel %vm471, %v395, 0
    %v476 = vsel %vm60, %v450, 0
    %v478 = vsel %vm60, %v453, 0
    %480 = vmatpush.bf16.msra.mxu0 0
    %481 = vmatpush.bf16.msra.mxu0 0
    %482 = vmatpush.bf16.msra.mxu0 0
    %483 = vmatpush.bf16.msra.mxu0 0
    %484 = vmatpush.bf16.msra.mxu0 0
    %485 = vmatpush.bf16.msra.mxu0 0
    %486 = vmatpush.bf16.msra.mxu0 %v476
    %487 = vmatpush.bf16.msra.mxu0 %v460
    %488 = vmatmul.bf16.gmra.mxu0 %v473
    %v489 = vpop.f32.mrf.mxu0
    %v490 = vadd.f32 %v469, %v489
    %v491 = vpop.f32.mrf.mxu0
    %492 = vdwg.mxu0
    %493 = vmatpush.bf16.msra.mxu0 0
    %494 = vmatpush.bf16.msra.mxu0 0
    %495 = vmatpush.bf16.msra.mxu0 0
    %496 = vmatpush.bf16.msra.mxu0 0
    %497 = vmatpush.bf16.msra.mxu0 0
    %498 = vmatpush.bf16.msra.mxu0 0
    %499 = vmatpush.bf16.msra.mxu0 %v478
    %500 = vmatpush.bf16.msra.mxu0 %v464
    %501 = vmatmul.bf16.gmra.mxu0 %v473
    %v502 = vpop.f32.mrf.mxu0
    %v503 = vadd.f32 %v469, %v502
    %v504 = vpop.f32.mrf.mxu0
    %505 = vdwg.mxu0
    %v506 = vrot.slane %v490, 4
    %v507 = vadd.f32 %v490, %v506
    %v508 = vrot.slane %v507, 2
    %v509 = vadd.f32 %v507, %v508
    %v510 = vrot.slane %v509, 1
    %v511 = vadd.f32 %v509, %v510
    %v512 = vrot.slane %v503, 4
    %v513 = vadd.f32 %v503, %v512
    %v514 = vrot.slane %v513, 2
    %v515 = vadd.f32 %v513, %v514
    %v516 = vrot.slane %v515, 1
    %v517 = vadd.f32 %v515, %v516
    %v518 = vmul.f32 %v511, %v199
    %v519 = vmul.f32 %v517, %v199
    %v520 = vsub.f32 %v490, %v518
    %v521 = vsub.f32 %v503, %v519
    %v522 = vmul.f32 %v520, %v520
    %v523 = vmul.f32 %v521, %v521
    %v524 = vrot.slane %v522, 4
    %v525 = vadd.f32 %v522, %v524
    %v526 = vrot.slane %v525, 2
    %v527 = vadd.f32 %v525, %v526
    %v528 = vrot.slane %v527, 1
    %v529 = vadd.f32 %v527, %v528
    %v530 = vrot.slane %v523, 4
    %v531 = vadd.f32 %v523, %v530
    %v532 = vrot.slane %v531, 2
    %v533 = vadd.f32 %v531, %v532
    %v534 = vrot.slane %v533, 1
    %v535 = vadd.f32 %v533, %v534
    %v536 = vmul.f32 %v529, %v224
    %v537 = vmul.f32 %v535, %v224
    %v538 = vrsqrt.pop %v536
    %v539 = vmul.f32 %v538, %v536
    %v540 = vmul.f32 %v539, %v538
    %v541 = vmul.f32 0.5, %v540
    %v542 = vsub.f32 1.5, %v541
    %v543 = vmul.f32 %v538, %v542
    %v544 = vmul.f32 %v536, %v543
    %vm545 = vcmp.eq.f32.partialorder %v536, inf
    %v546 = vsel %vm545, %v536, %v544
    %vm547 = vcmp.eq.f32.partialorder %v536, 0.0
    %v548 = vand.u32 %v536, 2147483648
    %v549 = vsel %vm547, %v548, %v546
    %v550 = vrsqrt.pop %v537
    %v551 = vmul.f32 %v550, %v537
    %v552 = vmul.f32 %v551, %v550
    %v553 = vmul.f32 0.5, %v552
    %v554 = vsub.f32 1.5, %v553
    %v555 = vmul.f32 %v550, %v554
    %v556 = vmul.f32 %v537, %v555
    %vm557 = vcmp.eq.f32.partialorder %v537, inf
    %v558 = vsel %vm557, %v537, %v556
    %vm559 = vcmp.eq.f32.partialorder %v537, 0.0
    %v560 = vand.u32 %v537, 2147483648
    %v561 = vsel %vm559, %v560, %v558
    %v562 = vadd.f32 %v549, 1e-06
    %v563 = vadd.f32 %v561, 1e-06
    %v564 = vrcp.pop %v562
    %v565 = vmul.f32 %v562, %v564
    %v566 = vsub.f32 1.0, %v565
    %v567 = vmul.f32 %v564, %v566
    %v568 = vadd.f32 %v564, %v567
    %vm569 = vweird.f32 %v562
    %vm570 = vweird.f32 %v564
    %vm571 = vmor %vm569, %vm570
    %v572 = vsel %vm571, %v564, %v568
    %v573 = vand.u32 2147483647, %v562
    %vm574 = vcmp.eq.f32.partialorder %v573, 8.507059e+37
    %v575 = vand.u32 %v562, 2147483648
    %v576 = vor.u32 1.1754944e-38, %v575
    %v577 = vsel %vm574, %v576, %v572
    %v578 = vmul.f32 1.0, %v577
    %v579 = vrcp.pop %v563
    %v580 = vmul.f32 %v563, %v579
    %v581 = vsub.f32 1.0, %v580
    %v582 = vmul.f32 %v579, %v581
    %v583 = vadd.f32 %v579, %v582
    %vm584 = vweird.f32 %v563
    %vm585 = vweird.f32 %v579
    %vm586 = vmor %vm584, %vm585
    %v587 = vsel %vm586, %v579, %v583
    %v588 = vand.u32 2147483647, %v563
    %vm589 = vcmp.eq.f32.partialorder %v588, 8.507059e+37
    %v590 = vand.u32 %v563, 2147483648
    %v591 = vor.u32 1.1754944e-38, %v590
    %v592 = vsel %vm589, %v591, %v587
    %v593 = vmul.f32 1.0, %v592
    %v594 = vmul.f32 %v520, %v578
    %v595 = vmul.f32 %v521, %v593
    %597 = vset.pattern.permute.xlu0 0
    %598 = vperm.xlu0 %597, %v37
    %v599 = vpop.permute.xlu0 %598
    %v601 = vmul.f32 %v599, %v594
    %v602 = vmul.f32 %v599, %v595
    %604 = vset.pattern.permute.xlu0 0
    %605 = vperm.xlu0 %604, %v39
    %v606 = vpop.permute.xlu0 %605
    %v608 = vadd.f32 %v601, %v606
    %v609 = vadd.f32 %v602, %v606
    %v610 = vmul.f32 %v608, 0.5
    %v611 = vmul.f32 %v609, 0.5
    %v612 = vmul.f32 %v608, 0.70710677
    %v613 = vmul.f32 %v609, 0.70710677
    %v614 = vmul.f32 %v612, %v612
    %v615 = vmin.f32 16.0, %v614
    %v616 = vmul.f32 %v615, 2.1237322e-06
    %v617 = vadd.f32 %v616, 0.00028619796
    %v618 = vmul.f32 %v615, %v617
    %v619 = vadd.f32 %v618, 0.0036580483
    %v620 = vmul.f32 %v615, %v619
    %v621 = vadd.f32 %v620, 0.05243302
    %v622 = vmul.f32 %v615, %v621
    %v623 = vadd.f32 %v622, 0.18741608
    %v624 = vmul.f32 %v615, %v623
    %v625 = vadd.f32 %v624, 1.1283791
    %v626 = vmul.f32 %v612, %v625
    %v627 = vmul.f32 %v615, 3.8918573e-05
    %v628 = vadd.f32 %v627, 0.001143296
    %v629 = vmul.f32 %v615, %v628
    %v630 = vadd.f32 %v629, 0.014752088
    %v631 = vmul.f32 %v615, %v630
    %v632 = vadd.f32 %v631, 0.112945676
    %v633 = vmul.f32 %v615, %v632
    %v634 = vadd.f32 %v633, 0.4994258
    %v635 = vmul.f32 %v615, %v634
    %v636 = vadd.f32 %v635, 1.0
    %v637 = vrcp.pop %v636
    %v638 = vmul.f32 %v636, %v637
    %v639 = vsub.f32 1.0, %v638
    %v640 = vmul.f32 %v637, %v639
    %v641 = vadd.f32 %v637, %v640
    %vm642 = vweird.f32 %v636
    %vm643 = vweird.f32 %v637
    %vm644 = vmor %vm642, %vm643
    %v645 = vsel %vm644, %v637, %v641
    %v646 = vand.u32 2147483647, %v636
    %vm647 = vcmp.eq.f32.partialorder %v646, 8.507059e+37
    %v648 = vand.u32 %v636, 2147483648
    %v649 = vor.u32 1.1754944e-38, %v648
    %v650 = vsel %vm647, %v649, %v645
    %v651 = vmul.f32 %v626, %v650
    %v652 = vmin.f32 %v651, 1.0
    %v653 = vmax.f32 %v652, -1.0
    %v654 = vmul.f32 %v613, %v613
    %v655 = vmin.f32 16.0, %v654
    %v656 = vmul.f32 %v655, 2.1237322e-06
    %v657 = vadd.f32 %v656, 0.00028619796
    %v658 = vmul.f32 %v655, %v657
    %v659 = vadd.f32 %v658, 0.0036580483
    %v660 = vmul.f32 %v655, %v659
    %v661 = vadd.f32 %v660, 0.05243302
    %v662 = vmul.f32 %v655, %v661
    %v663 = vadd.f32 %v662, 0.18741608
    %v664 = vmul.f32 %v655, %v663
    %v665 = vadd.f32 %v664, 1.1283791
    %v666 = vmul.f32 %v613, %v665
    %v667 = vmul.f32 %v655, 3.8918573e-05
    %v668 = vadd.f32 %v667, 0.001143296
    %v669 = vmul.f32 %v655, %v668
    %v670 = vadd.f32 %v669, 0.014752088
    %v671 = vmul.f32 %v655, %v670
    %v672 = vadd.f32 %v671, 0.112945676
    %v673 = vmul.f32 %v655, %v672
    %v674 = vadd.f32 %v673, 0.4994258
    %v675 = vmul.f32 %v655, %v674
    %v676 = vadd.f32 %v675, 1.0
    %v677 = vrcp.pop %v676
    %v678 = vmul.f32 %v676, %v677
    %v679 = vsub.f32 1.0, %v678
    %v680 = vmul.f32 %v677, %v679
    %v681 = vadd.f32 %v677, %v680
    %vm682 = vweird.f32 %v676
    %vm683 = vweird.f32 %v677
    %vm684 = vmor %vm682, %vm683
    %v685 = vsel %vm684, %v677, %v681
    %v686 = vand.u32 2147483647, %v676
    %vm687 = vcmp.eq.f32.partialorder %v686, 8.507059e+37
    %v688 = vand.u32 %v676, 2147483648
    %v689 = vor.u32 1.1754944e-38, %v688
    %v690 = vsel %vm687, %v689, %v685
    %v691 = vmul.f32 %v666, %v690
    %v692 = vmin.f32 %v691, 1.0
    %v693 = vmax.f32 %v692, -1.0
    %v694 = vadd.f32 %v653, 1.0
    %v695 = vadd.f32 %v693, 1.0
    %v696 = vmul.f32 %v610, %v694
    %v697 = vmul.f32 %v611, %v695
    %v698 = vmul.f32 %v696, %v388
    %v699 = vmul.f32 %v697, %v389
    %700 = vst [vmem:[#allocation2] sm:$0xff] %v698
    %701 = vst [vmem:[#allocation2 + $0x8] sm:$0xff] %v699
    // Predicated region
    $region30: #{tpu_custom_call.1} parent=1 // pred_check
      _
    $region31: #{tpu_custom_call.1} parent=1 // pred_check_branch
      %703 = sbr.rel (0) target = $region33
    $region32: #{tpu_custom_call.1} parent=1 // pred_region
      %705 = vsyncadd [#allocation3], 0
      %s707 = sshll.u32 [#allocation2], 4
      %s708 = int_to_ptr.vmem [resolvable:$true] %s707
      %s709 = sshll.u32 %s7, 4
      %s710 = int_to_ptr.hbm [resolvable:$true] %s709
      %712 = dma.vmem_to_hbm [thread:$0]  %s708, 256, %s710, [#allocation3]
    $region33: #{tpu_custom_call.1} parent=1 // pred_fallthru
      _
    // Predicated region
    $region34: #{tpu_custom_call.1} parent=1 // pred_check
      _
    $region35: #{tpu_custom_call.1} parent=1 // pred_check_branch
      %714 = sbr.rel (0) target = $region37
    $region36: #{tpu_custom_call.1} parent=1 // pred_region
      %716 = dma.done [#allocation3], 256
    $region37: #{tpu_custom_call.1} parent=1 // pred_fallthru
      _
    %717 = vsyncpa [#allocation3], 1

</llo_original>
